<compile_context>
chip_gen: v5e
topology: v5e:2x2
jax: 0.10.0
libtpu: 0.0.40
codegen_flags: <defaults>
</compile_context>

<pallas_src>
import functools

import jax
import jax.numpy as jnp
from jax.experimental import pallas as pl
from jax.experimental.pallas import tpu as pltpu  # noqa: F401  (kept for parity with the template)

BN_EPS = 1e-5
LANE = 128


def _round_up(n, m):
    return ((n + m - 1) // m) * m


def _het_mlp_kernel(n_bin, matmul_dtype,
                    x_ref,
                    w1_ref, g1_ref, be1_ref,
                    w2_ref, g2_ref, be2_ref,
                    w3_ref, b3_ref,
                    out_ref):
    md = matmul_dtype

    def bn_relu(h, g_ref, be_ref):
        # Training-mode BatchNorm1d with batch stats (biased variance), folded
        # into a single per-column scale/shift, then ReLU.
        mu = jnp.mean(h, axis=0, keepdims=True)
        d = h - mu
        var = jnp.mean(d * d, axis=0, keepdims=True)            # biased variance
        scale = g_ref[...] * jax.lax.rsqrt(var + BN_EPS)         # rsqrt -> EUP
        shift = be_ref[...] - mu * scale
        return jnp.maximum(h * scale + shift, 0.0)

    x = x_ref[...]

    # ---- fc1 (bias dropped: cancels under training-mode BN) -> BN -> ReLU ----
    h = jnp.dot(x.astype(md), w1_ref[...].astype(md),
                preferred_element_type=jnp.float32)
    h = bn_relu(h, g1_ref, be1_ref)

    # ---- fc2 (bias dropped) -> BN -> ReLU ------------------------------------
    h = jnp.dot(h.astype(md), w2_ref[...].astype(md),
                preferred_element_type=jnp.float32)
    h = bn_relu(h, g2_ref, be2_ref)

    # ---- fc3 ------------------------------------------------------------------
    o = jnp.dot(h.astype(md), w3_ref[...].astype(md),
                preferred_element_type=jnp.float32) + b3_ref[...]

    # ---- column-wise head: sigmoid on the first n_bin columns, relu on the rest.
    # concat(sigmoid(o[:, :n_bin]), relu(o[:, n_bin:])) preserves column order,
    # so one full-width (lane-dense, unmasked) select/store reproduces it exactly.
    col = jax.lax.broadcasted_iota(jnp.int32, o.shape, 1)
    sig = pl.reciprocal(1.0 + jnp.exp(-o), approx=True)          # exp + rcp -> EUP
    rel = jnp.maximum(o, 0.0)
    out_ref[...] = jnp.where(col < n_bin, sig, rel).astype(out_ref.dtype)


def generative_model_het_forward(x, params, n_binary_columns,
                                 matmul_dtype=jnp.bfloat16):
    """Runs the full forward pass in one Pallas kernel invocation.

    Feature dims are zero-padded to multiples of 128 (lane-dense MXU tiles and
    unmasked output stores); padded output columns are sliced off outside the
    kernel. fc1/fc2 biases are intentionally not given to the kernel.
    """
    (w1, b1, g1, be1, w2, b2, g2, be2, w3, b3) = params
    del b1, b2  # exactly cancelled by the training-mode BatchNorm that follows

    batch, _ = x.shape
    h1 = w1.shape[1]
    h2 = w2.shape[1]
    out_size = w3.shape[1]

    h1p = _round_up(h1, LANE)
    h2p = _round_up(h2, LANE)
    outp = _round_up(out_size, LANE)

    def pad_cols(a, new_cols, value=0.0):
        return jnp.pad(a, ((0, 0), (0, new_cols - a.shape[1])),
                       constant_values=value)

    # Zero-padded weight columns produce all-zero pre-activations; with
    # var=0, scale=gamma*rsqrt(eps) is finite and the padded activations stay
    # exactly 0, so padding never leaks into the real columns.
    w1p = pad_cols(w1, h1p)
    g1p = pad_cols(g1, h1p, 1.0)
    be1p = pad_cols(be1, h1p)

    w2p = jnp.pad(w2, ((0, h1p - h1), (0, h2p - h2)))
    g2p = pad_cols(g2, h2p, 1.0)
    be2p = pad_cols(be2, h2p)

    w3p = jnp.pad(w3, ((0, h2p - h2), (0, outp - out_size)))
    b3p = pad_cols(b3, outp)

    operands = (x, w1p, g1p, be1p, w2p, g2p, be2p, w3p, b3p)

    def full_spec(arr):
        # Single grid step; every operand is one full-array block resident in VMEM.
        return pl.BlockSpec(arr.shape, lambda: tuple(0 for _ in arr.shape))

    kernel = functools.partial(_het_mlp_kernel, int(n_binary_columns), matmul_dtype)

    out_padded = pl.pallas_call(
        kernel,
        out_shape=jax.ShapeDtypeStruct((batch, outp), jnp.float32),
        grid=(),
        in_specs=[full_spec(a) for a in operands],
        out_specs=pl.BlockSpec((batch, outp), lambda: (0, 0)),
        # No vmem_limit override: total VMEM footprint here is far below the
        # default scoped limit on v5e/v6e/v7x.
    )(*operands)

    # TODO(synk): for large batches, switch to a batch-tiled grid with resident
    # weights and a two-phase BN reduction (size tiles against v7x's 64 MiB VMEM).
    return out_padded[:, :out_size]


def init_params(key, input_size, hidden_size_1, hidden_size_2, output_size):
    """Deterministic synthetic parameters (shapes match the nn.Module __init__)."""
    ks = jax.random.split(key, 6)

    def linear(kw, kb, fan_in, fan_out):
        bound = 1.0 / jnp.sqrt(fan_in)
        w = jax.random.uniform(kw, (fan_in, fan_out), jnp.float32, -bound, bound)
        b = jax.random.uniform(kb, (1, fan_out), jnp.float32, -bound, bound)
        return w, b

    w1, b1 = linear(ks[0], ks[1], input_size, hidden_size_1)
    w2, b2 = linear(ks[2], ks[3], hidden_size_1, hidden_size_2)
    w3, b3 = linear(ks[4], ks[5], hidden_size_2, output_size)

    # BatchNorm affine params (PyTorch init: weight=1, bias=0).
    g1 = jnp.ones((1, hidden_size_1), jnp.float32)
    be1 = jnp.zeros((1, hidden_size_1), jnp.float32)
    g2 = jnp.ones((1, hidden_size_2), jnp.float32)
    be2 = jnp.zeros((1, hidden_size_2), jnp.float32)

    return (w1, b1, g1, be1, w2, b2, g2, be2, w3, b3)


def reference_forward(x, params, n_binary_columns):
    """Pure-JAX f32 reference mirroring the PyTorch forward (training-mode BN,
    biases included — they cancel under BN, which the kernel exploits)."""
    (w1, b1, g1, be1, w2, b2, g2, be2, w3, b3) = params

    def bn(h, g, be):
        mu = jnp.mean(h, axis=0, keepdims=True)
        var = jnp.mean((h - mu) ** 2, axis=0, keepdims=True)
        return (h - mu) / jnp.sqrt(var + BN_EPS) * g + be

    h = jnp.maximum(bn(x @ w1 + b1, g1, be1), 0.0)
    h = jnp.maximum(bn(h @ w2 + b2, g2, be2), 0.0)
    o = h @ w3 + b3
    out_bin = jax.nn.sigmoid(o[:, :n_binary_columns])
    out_cat = jnp.maximum(o[:, n_binary_columns:], 0.0)
    return jnp.concatenate([out_bin, out_cat], axis=1)


if __name__ == "__main__":
    # Small, module-consistent sizes.
    batch = 8
    input_size = 32
    hidden_size_1 = 64
    hidden_size_2 = 64
    output_size = 16
    binary_columns = list(range(5))        # 5 binary output columns
    categorical_columns = list(range(5, output_size))
    n_bin = len(binary_columns)

    key = jax.random.PRNGKey(0)
    k_x, k_p = jax.random.split(key)
    x = jax.random.normal(k_x, (batch, input_size), jnp.float32)
    params = init_params(k_p, input_size, hidden_size_1, hidden_size_2, output_size)

    ref = reference_forward(x, params, n_bin)

    # Default path: bf16 MXU operands, f32 accumulation / BN / activations.
    out = generative_model_het_forward(x, params, n_bin)
    out = jax.block_until_ready(out)
    assert out.shape == (batch, output_size)
    assert bool(jnp.all(jnp.isfinite(out)))
    # bf16 operand rounding through three matmuls + two BN renormalizations.
    assert jnp.allclose(out, ref, atol=3e-2, rtol=3e-2), "bf16 path mismatch vs reference"

    # f32-matmul path: tight check that the bias-drop + folded-BN math is exact
    # (tolerance only covers the approx EUP reciprocal in the sigmoid head).
    out_f32 = generative_model_het_forward(x, params, n_bin, matmul_dtype=jnp.float32)
    out_f32 = jax.block_until_ready(out_f32)
    assert jnp.allclose(out_f32, ref, atol=5e-3, rtol=5e-3), "f32 path mismatch vs reference"

    print("KERNEL_OK")
</pallas_src>

<mosaic_0001>
module attributes {stable_mosaic.version = 11 : i64} {
  func.func @_het_mlp_kernel(%arg0: memref<8x32xf32, #tpu.memory_space<vmem>>, %arg1: memref<32x128xf32, #tpu.memory_space<vmem>>, %arg2: memref<1x128xf32, #tpu.memory_space<vmem>>, %arg3: memref<1x128xf32, #tpu.memory_space<vmem>>, %arg4: memref<128x128xf32, #tpu.memory_space<vmem>>, %arg5: memref<1x128xf32, #tpu.memory_space<vmem>>, %arg6: memref<1x128xf32, #tpu.memory_space<vmem>>, %arg7: memref<128x128xf32, #tpu.memory_space<vmem>>, %arg8: memref<1x128xf32, #tpu.memory_space<vmem>>, %arg9: memref<8x128xf32, #tpu.memory_space<vmem>>) attributes {dimension_semantics = [], scalar_prefetch = 0 : i64, scratch_operands = 0 : i64, tpu.core_type = #tpu.core_type<tc>} {
    %c0 = arith.constant 0 : index
    %c0_0 = arith.constant 0 : index
    %0 = vector.load %arg0[%c0, %c0_0] : memref<8x32xf32, #tpu.memory_space<vmem>>, vector<8x32xf32>
    %1 = arith.truncf %0 : vector<8x32xf32> to vector<8x32xbf16>
    %c0_1 = arith.constant 0 : index
    %c0_2 = arith.constant 0 : index
    %2 = vector.load %arg1[%c0_1, %c0_2] : memref<32x128xf32, #tpu.memory_space<vmem>>, vector<32x128xf32>
    %3 = arith.truncf %2 : vector<32x128xf32> to vector<32x128xbf16>
    %cst = arith.constant dense<0.000000e+00> : vector<8x128xf32>
    %4 = tpu.matmul %1, %3, %cst {dimension_numbers = #tpu.dot_dimension_numbers<[1], [0], [0], [1], [0, 0, 1, 1], [], []>} : vector<8x32xbf16>, vector<32x128xbf16>, vector<8x128xf32> -> vector<8x128xf32>
    %cst_3 = arith.constant dense<0.000000e+00> : vector<128xf32>
    %5 = vector.multi_reduction <add>, %4, %cst_3 [0] : vector<8x128xf32> to vector<128xf32>
    %6 = vector.shape_cast %5 : vector<128xf32> to vector<1x128xf32>
    %cst_4 = arith.constant 8.000000e+00 : f32
    %7 = vector.broadcast %cst_4 : f32 to vector<1x128xf32>
    %8 = arith.divf %6, %7 : vector<1x128xf32>
    %9 = vector.broadcast %8 : vector<1x128xf32> to vector<8x128xf32>
    %10 = arith.subf %4, %9 : vector<8x128xf32>
    %11 = arith.mulf %10, %10 : vector<8x128xf32>
    %cst_5 = arith.constant dense<0.000000e+00> : vector<128xf32>
    %12 = vector.multi_reduction <add>, %11, %cst_5 [0] : vector<8x128xf32> to vector<128xf32>
    %13 = vector.shape_cast %12 : vector<128xf32> to vector<1x128xf32>
    %cst_6 = arith.constant 8.000000e+00 : f32
    %14 = vector.broadcast %cst_6 : f32 to vector<1x128xf32>
    %15 = arith.divf %13, %14 : vector<1x128xf32>
    %c0_7 = arith.constant 0 : index
    %c0_8 = arith.constant 0 : index
    %16 = vector.load %arg2[%c0_7, %c0_8] : memref<1x128xf32, #tpu.memory_space<vmem>>, vector<1x128xf32>
    %cst_9 = arith.constant 9.99999974E-6 : f32
    %17 = vector.broadcast %cst_9 : f32 to vector<1x128xf32>
    %18 = arith.addf %15, %17 : vector<1x128xf32>
    %19 = math.rsqrt %18 : vector<1x128xf32>
    %20 = arith.mulf %16, %19 : vector<1x128xf32>
    %c0_10 = arith.constant 0 : index
    %c0_11 = arith.constant 0 : index
    %21 = vector.load %arg3[%c0_10, %c0_11] : memref<1x128xf32, #tpu.memory_space<vmem>>, vector<1x128xf32>
    %22 = arith.mulf %8, %20 : vector<1x128xf32>
    %23 = arith.subf %21, %22 : vector<1x128xf32>
    %24 = vector.broadcast %20 : vector<1x128xf32> to vector<8x128xf32>
    %25 = arith.mulf %4, %24 : vector<8x128xf32>
    %26 = vector.broadcast %23 : vector<1x128xf32> to vector<8x128xf32>
    %27 = arith.addf %25, %26 : vector<8x128xf32>
    %cst_12 = arith.constant 0.000000e+00 : f32
    %28 = vector.broadcast %cst_12 : f32 to vector<8x128xf32>
    %29 = arith.maximumf %27, %28 : vector<8x128xf32>
    %30 = arith.truncf %29 : vector<8x128xf32> to vector<8x128xbf16>
    %c0_13 = arith.constant 0 : index
    %c0_14 = arith.constant 0 : index
    %31 = vector.load %arg4[%c0_13, %c0_14] : memref<128x128xf32, #tpu.memory_space<vmem>>, vector<128x128xf32>
    %32 = arith.truncf %31 : vector<128x128xf32> to vector<128x128xbf16>
    %cst_15 = arith.constant dense<0.000000e+00> : vector<8x128xf32>
    %33 = tpu.matmul %30, %32, %cst_15 {dimension_numbers = #tpu.dot_dimension_numbers<[1], [0], [0], [1], [0, 0, 1, 1], [], []>} : vector<8x128xbf16>, vector<128x128xbf16>, vector<8x128xf32> -> vector<8x128xf32>
    %cst_16 = arith.constant dense<0.000000e+00> : vector<128xf32>
    %34 = vector.multi_reduction <add>, %33, %cst_16 [0] : vector<8x128xf32> to vector<128xf32>
    %35 = vector.shape_cast %34 : vector<128xf32> to vector<1x128xf32>
    %cst_17 = arith.constant 8.000000e+00 : f32
    %36 = vector.broadcast %cst_17 : f32 to vector<1x128xf32>
    %37 = arith.divf %35, %36 : vector<1x128xf32>
    %38 = vector.broadcast %37 : vector<1x128xf32> to vector<8x128xf32>
    %39 = arith.subf %33, %38 : vector<8x128xf32>
    %40 = arith.mulf %39, %39 : vector<8x128xf32>
    %cst_18 = arith.constant dense<0.000000e+00> : vector<128xf32>
    %41 = vector.multi_reduction <add>, %40, %cst_18 [0] : vector<8x128xf32> to vector<128xf32>
    %42 = vector.shape_cast %41 : vector<128xf32> to vector<1x128xf32>
    %cst_19 = arith.constant 8.000000e+00 : f32
    %43 = vector.broadcast %cst_19 : f32 to vector<1x128xf32>
    %44 = arith.divf %42, %43 : vector<1x128xf32>
    %c0_20 = arith.constant 0 : index
    %c0_21 = arith.constant 0 : index
    %45 = vector.load %arg5[%c0_20, %c0_21] : memref<1x128xf32, #tpu.memory_space<vmem>>, vector<1x128xf32>
    %cst_22 = arith.constant 9.99999974E-6 : f32
    %46 = vector.broadcast %cst_22 : f32 to vector<1x128xf32>
    %47 = arith.addf %44, %46 : vector<1x128xf32>
    %48 = math.rsqrt %47 : vector<1x128xf32>
    %49 = arith.mulf %45, %48 : vector<1x128xf32>
    %c0_23 = arith.constant 0 : index
    %c0_24 = arith.constant 0 : index
    %50 = vector.load %arg6[%c0_23, %c0_24] : memref<1x128xf32, #tpu.memory_space<vmem>>, vector<1x128xf32>
    %51 = arith.mulf %37, %49 : vector<1x128xf32>
    %52 = arith.subf %50, %51 : vector<1x128xf32>
    %53 = vector.broadcast %49 : vector<1x128xf32> to vector<8x128xf32>
    %54 = arith.mulf %33, %53 : vector<8x128xf32>
    %55 = vector.broadcast %52 : vector<1x128xf32> to vector<8x128xf32>
    %56 = arith.addf %54, %55 : vector<8x128xf32>
    %cst_25 = arith.constant 0.000000e+00 : f32
    %57 = vector.broadcast %cst_25 : f32 to vector<8x128xf32>
    %58 = arith.maximumf %56, %57 : vector<8x128xf32>
    %59 = arith.truncf %58 : vector<8x128xf32> to vector<8x128xbf16>
    %c0_26 = arith.constant 0 : index
    %c0_27 = arith.constant 0 : index
    %60 = vector.load %arg7[%c0_26, %c0_27] : memref<128x128xf32, #tpu.memory_space<vmem>>, vector<128x128xf32>
    %61 = arith.truncf %60 : vector<128x128xf32> to vector<128x128xbf16>
    %cst_28 = arith.constant dense<0.000000e+00> : vector<8x128xf32>
    %62 = tpu.matmul %59, %61, %cst_28 {dimension_numbers = #tpu.dot_dimension_numbers<[1], [0], [0], [1], [0, 0, 1, 1], [], []>} : vector<8x128xbf16>, vector<128x128xbf16>, vector<8x128xf32> -> vector<8x128xf32>
    %c0_29 = arith.constant 0 : index
    %c0_30 = arith.constant 0 : index
    %63 = vector.load %arg8[%c0_29, %c0_30] : memref<1x128xf32, #tpu.memory_space<vmem>>, vector<1x128xf32>
    %64 = vector.broadcast %63 : vector<1x128xf32> to vector<8x128xf32>
    %65 = arith.addf %62, %64 : vector<8x128xf32>
    %66 = tpu.iota {dimensions = array<i32: 1>} : vector<8x128xi32>
    %cst_31 = arith.constant 0.000000e+00 : f32
    %67 = vector.broadcast %cst_31 : f32 to vector<8x128xf32>
    %68 = arith.subf %67, %65 : vector<8x128xf32>
    %69 = math.exp %68 : vector<8x128xf32>
    %cst_32 = arith.constant 1.000000e+00 : f32
    %70 = vector.broadcast %cst_32 : f32 to vector<8x128xf32>
    %71 = arith.addf %70, %69 : vector<8x128xf32>
    %72 = tpu.reciprocal %71 {approx = true} : vector<8x128xf32> -> vector<8x128xf32>
    %cst_33 = arith.constant 0.000000e+00 : f32
    %73 = vector.broadcast %cst_33 : f32 to vector<8x128xf32>
    %74 = arith.maximumf %65, %73 : vector<8x128xf32>
    %c5_i32 = arith.constant 5 : i32
    %75 = vector.broadcast %c5_i32 : i32 to vector<8x128xi32>
    %76 = arith.cmpi slt, %66, %75 : vector<8x128xi32>
    %77 = arith.select %76, %72, %74 : vector<8x128xi1>, vector<8x128xf32>
    %c0_34 = arith.constant 0 : index
    %c0_35 = arith.constant 0 : index
    %78 = vector.load %arg9[%c0_34, %c0_35] : memref<8x128xf32, #tpu.memory_space<vmem>>, vector<8x128xf32>
    tpu.vector_store %arg9[%c0_34, %c0_35], %77 {strides = array<i32>} : memref<8x128xf32, #tpu.memory_space<vmem>>, vector<8x128xf32>,
    return
  }
}

</mosaic_0001>

<llo_original>
// kernel: tpu_custom_call.1
$region0: #{tpu_custom_call.1}
  #allocation0 [shape = 'u32[]', space=smem, size = 0x4, offset = 0x4, fixed_abs, tag = 'smem constant byte address 0x4 - core index']
  #allocation1 [shape = 'u32[72,128]{1,0:T(1,128)}', space=vmem, size = 0x9000, scoped, tag = 'internal scratch']
  %s0 = inlined_call_operand.hbm [shape: f32[8,32], index: 0, kind: input, shape index: {}]
  %s1 = inlined_call_operand.hbm [shape: f32[32,128], index: 1, kind: input, shape index: {}]
  %s2 = inlined_call_operand.vmem [shape: f32[1,128], index: 2, kind: input, shape index: {}]
  %s3 = inlined_call_operand.vmem [shape: f32[1,128], index: 3, kind: input, shape index: {}]
  %s4 = inlined_call_operand.hbm [shape: f32[128,128], index: 4, kind: input, shape index: {}]
  %s5 = inlined_call_operand.vmem [shape: f32[1,128], index: 5, kind: input, shape index: {}]
  %s6 = inlined_call_operand.vmem [shape: f32[1,128], index: 6, kind: input, shape index: {}]
  %s7 = inlined_call_operand.hbm [shape: f32[128,128], index: 7, kind: input, shape index: {}]
  %s8 = inlined_call_operand.vmem [shape: f32[1,128], index: 8, kind: input, shape index: {}]
  %s9 = inlined_call_operand.hbm [shape: f32[8,128], index: 9, kind: output, shape index: {}]
  %s10 = sld [smem:[#allocation0]]
  $region62: #{tpu_custom_call.1} parent=0
    _
  %s12 = ssub.s32 1, %s10
  %s13 = scalar_select 0, %s12, %s10
  $region1: #{tpu_custom_call.1} parent=0
    #allocation2 [shape = 'u8[4096]{0}', space=vmem, size = 0x1000, scoped, tag = 'input window, operand 0, single buffered']
    #allocation3 [shape = 's32[1]{0}', space=sflag, size = 0x4, scoped, tag = 'scoped memory for tpu_custom_call.1']
    #allocation4 [shape = 's32[1]{0}', space=sflag, size = 0x4, scoped, tag = 'scoped memory for tpu_custom_call.1']
    #allocation5 [shape = 'u8[16384]{0}', space=vmem, size = 0x4000, scoped, tag = 'input window, operand 1, single buffered']
    #allocation6 [shape = 's32[1]{0}', space=sflag, size = 0x4, scoped, tag = 'scoped memory for tpu_custom_call.1']
    #allocation7 [shape = 'u8[65536]{0}', space=vmem, size = 0x10000, scoped, tag = 'input window, operand 4, single buffered']
    #allocation8 [shape = 'u8[65536]{0}', space=vmem, size = 0x10000, scoped, tag = 'input window, operand 7, single buffered']
    #allocation9 [shape = 's32[1]{0}', space=sflag, size = 0x4, scoped, tag = 'scoped memory for tpu_custom_call.1']
    #allocation10 [shape = 'u8[4096]{0}', space=vmem, size = 0x1000, scoped, tag = 'output window, operand 0, single buffered']
    %14 = vsyncpa [#allocation3], 0
    %15 = vsyncpa [#allocation6], 0
    %16 = vsyncpa [#allocation9], 0
    %17 = vsyncpa [#allocation4], 0
    // Predicated region
    $region2: #{tpu_custom_call.1} parent=1 // pred_check
      _
    $region3: #{tpu_custom_call.1} parent=1 // pred_check_branch
      %19 = sbr.rel (0) target = $region5
    $region4: #{tpu_custom_call.1} parent=1 // pred_region
      %21 = vsyncadd [#allocation3], 0
      %s23 = sshll.u32 %s0, 4
      %s24 = int_to_ptr.hbm [resolvable:$true] %s23
      %s25 = sshll.u32 [#allocation2], 4
      %s26 = int_to_ptr.vmem [resolvable:$true] %s25
      %28 = dma.hbm_to_vmem [thread:$0]  %s24, 128, %s26, [#allocation3]
    $region5: #{tpu_custom_call.1} parent=1 // pred_fallthru
      _
    // Predicated region
    $region6: #{tpu_custom_call.1} parent=1 // pred_check
      _
    $region7: #{tpu_custom_call.1} parent=1 // pred_check_branch
      %30 = sbr.rel (0) target = $region9
    $region8: #{tpu_custom_call.1} parent=1 // pred_region
      %32 = vsyncadd [#allocation6], 0
      %s33 = sshll.u32 %s1, 4
      %s34 = int_to_ptr.hbm [resolvable:$true] %s33
      %s35 = sshll.u32 [#allocation5], 4
      %s36 = int_to_ptr.vmem [resolvable:$true] %s35
      %41 = dma.hbm_to_vmem [thread:$0]  %s34, 512, %s36, [#allocation6], 128, 128, 8
    $region9: #{tpu_custom_call.1} parent=1 // pred_fallthru
      _
    // Predicated region
    $region10: #{tpu_custom_call.1} parent=1 // pred_check
      _
    $region11: #{tpu_custom_call.1} parent=1 // pred_check_branch
      %43 = sbr.rel (0) target = $region13
    $region12: #{tpu_custom_call.1} parent=1 // pred_region
      _
    $region13: #{tpu_custom_call.1} parent=1 // pred_fallthru
      _
    // Predicated region
    $region14: #{tpu_custom_call.1} parent=1 // pred_check
      _
    $region15: #{tpu_custom_call.1} parent=1 // pred_check_branch
      %45 = sbr.rel (0) target = $region17
    $region16: #{tpu_custom_call.1} parent=1 // pred_region
      _
    $region17: #{tpu_custom_call.1} parent=1 // pred_fallthru
      _
    // Predicated region
    $region18: #{tpu_custom_call.1} parent=1 // pred_check
      _
    $region19: #{tpu_custom_call.1} parent=1 // pred_check_branch
      %47 = sbr.rel (0) target = $region21
    $region20: #{tpu_custom_call.1} parent=1 // pred_region
      %49 = vsyncadd [#allocation6], 0
      %s50 = sshll.u32 %s4, 4
      %s51 = int_to_ptr.hbm [resolvable:$true] %s50
      %s52 = sshll.u32 [#allocation7], 4
      %s53 = int_to_ptr.vmem [resolvable:$true] %s52
      %58 = dma.hbm_to_vmem [thread:$0]  %s51, 2048, %s53, [#allocation6], 128, 128, 8
    $region21: #{tpu_custom_call.1} parent=1 // pred_fallthru
      _
    // Predicated region
    $region22: #{tpu_custom_call.1} parent=1 // pred_check
      _
    $region23: #{tpu_custom_call.1} parent=1 // pred_check_branch
      %60 = sbr.rel (0) target = $region25
    $region24: #{tpu_custom_call.1} parent=1 // pred_region
      _
    $region25: #{tpu_custom_call.1} parent=1 // pred_fallthru
      _
    // Predicated region
    $region26: #{tpu_custom_call.1} parent=1 // pred_check
      _
    $region27: #{tpu_custom_call.1} parent=1 // pred_check_branch
      %62 = sbr.rel (0) target = $region29
    $region28: #{tpu_custom_call.1} parent=1 // pred_region
      _
    $region29: #{tpu_custom_call.1} parent=1 // pred_fallthru
      _
    // Predicated region
    $region30: #{tpu_custom_call.1} parent=1 // pred_check
      _
    $region31: #{tpu_custom_call.1} parent=1 // pred_check_branch
      %64 = sbr.rel (0) target = $region33
    $region32: #{tpu_custom_call.1} parent=1 // pred_region
      %66 = vsyncadd [#allocation9], 0
      %s67 = sshll.u32 %s7, 4
      %s68 = int_to_ptr.hbm [resolvable:$true] %s67
      %s69 = sshll.u32 [#allocation8], 4
      %s70 = int_to_ptr.vmem [resolvable:$true] %s69
      %75 = dma.hbm_to_vmem [thread:$0]  %s68, 2048, %s70, [#allocation9], 128, 128, 8
    $region33: #{tpu_custom_call.1} parent=1 // pred_fallthru
      _
    // Predicated region
    $region34: #{tpu_custom_call.1} parent=1 // pred_check
      _
    $region35: #{tpu_custom_call.1} parent=1 // pred_check_branch
      %77 = sbr.rel (0) target = $region37
    $region36: #{tpu_custom_call.1} parent=1 // pred_region
      _
    $region37: #{tpu_custom_call.1} parent=1 // pred_fallthru
      _
    // Predicated region
    $region38: #{tpu_custom_call.1} parent=1 // pred_check
      _
    $region39: #{tpu_custom_call.1} parent=1 // pred_check_branch
      %79 = sbr.rel (0) target = $region41
    $region40: #{tpu_custom_call.1} parent=1 // pred_region
      %81 = dma.done [#allocation3], 128
    $region41: #{tpu_custom_call.1} parent=1 // pred_fallthru
      _
    // Predicated region
    $region42: #{tpu_custom_call.1} parent=1 // pred_check
      _
    $region43: #{tpu_custom_call.1} parent=1 // pred_check_branch
      %83 = sbr.rel (0) target = $region45
    $region44: #{tpu_custom_call.1} parent=1 // pred_region
      %85 = dma.done [#allocation6], 512
    $region45: #{tpu_custom_call.1} parent=1 // pred_fallthru
      _
    // Predicated region
    $region46: #{tpu_custom_call.1} parent=1 // pred_check
      _
    $region47: #{tpu_custom_call.1} parent=1 // pred_check_branch
      %87 = sbr.rel (0) target = $region49
    $region48: #{tpu_custom_call.1} parent=1 // pred_region
      %89 = dma.done [#allocation6], 2048
    $region49: #{tpu_custom_call.1} parent=1 // pred_fallthru
      _
    // Predicated region
    $region50: #{tpu_custom_call.1} parent=1 // pred_check
      _
    $region51: #{tpu_custom_call.1} parent=1 // pred_check_branch
      %91 = sbr.rel (0) target = $region53
    $region52: #{tpu_custom_call.1} parent=1 // pred_region
      %93 = dma.done [#allocation9], 2048
    $region53: #{tpu_custom_call.1} parent=1 // pred_fallthru
      _
    %v95 = vld [vmem:[#allocation2] sm:$0xff]
    %v96 = vpack.c.bf16 %v95, %v95
    %v97 = vld [vmem:[#allocation5] sm:$0xff]
    %v98 = vld [vmem:[#allocation5 + $0x8] sm:$0xff]
    %v99 = vld [vmem:[#allocation5 + $0x10] sm:$0xff]
    %v100 = vld [vmem:[#allocation5 + $0x18] sm:$0xff]
    %v101 = vpack.c.bf16 %v98, %v97
    %v102 = vpack.c.bf16 %v100, %v99
    %vm103 = vcmask 261120
    %v105 = vsel %vm103, %v96, 0
    %107 = vmatpush.bf16.msra.mxu0 0
    %108 = vmatpush.bf16.msra.mxu0 0
    %109 = vmatpush.bf16.msra.mxu0 0
    %110 = vmatpush.bf16.msra.mxu0 0
    %111 = vmatpush.bf16.msra.mxu0 0
    %112 = vmatpush.bf16.msra.mxu0 0
    %113 = vmatpush.bf16.msra.mxu0 %v102
    %114 = vmatpush.bf16.msra.mxu0 %v101
    %115 = vmatmul.bf16.gmra.mxu0 %v105
    %v116 = vpop.f32.mrf.mxu0
    %v117 = vadd.f32 0.0, %v116
    %v118 = vpop.f32.mrf.mxu0
    %119 = vdwg.mxu0
    %v120 = vrot.slane %v117, 4
    %v121 = vadd.f32 %v117, %v120
    %v122 = vrot.slane %v121, 2
    %v123 = vadd.f32 %v121, %v122
    %v124 = vrot.slane %v123, 1
    %v125 = vadd.f32 %v123, %v124
    %v126 = vrcp.pop 8.0
    %v127 = vmul.f32 8.0, %v126
    %v128 = vsub.f32 1.0, %v127
    %v129 = vmul.f32 %v126, %v128
    %v130 = vadd.f32 %v126, %v129
    %vm131 = vweird.f32 %v126
    %v132 = vsel %vm131, %v126, %v130
    %v133 = vmul.f32 %v125, %v132
    %v134 = vsub.f32 %v117, %v133
    %v135 = vmul.f32 %v134, %v134
    %v136 = vrot.slane %v135, 4
    %v137 = vadd.f32 %v135, %v136
    %v138 = vrot.slane %v137, 2
    %v139 = vadd.f32 %v137, %v138
    %v140 = vrot.slane %v139, 1
    %v141 = vadd.f32 %v139, %v140
    %v142 = vmul.f32 %v141, %v132
    %v143 = vld [vmem:[%s2] sm:$0x1]
    %v144 = vadd.f32 %v142, 1e-05
    %v145 = vrsqrt.pop %v144
    %v146 = vmul.f32 %v145, %v144
    %v147 = vmul.f32 %v146, %v145
    %v148 = vmul.f32 0.5, %v147
    %v149 = vsub.f32 1.5, %v148
    %v150 = vmul.f32 %v145, %v149
    %vm151 = vweird.f32 %v144
    %vm152 = vweird.f32 %v145
    %vm153 = vmor %vm151, %vm152
    %v154 = vsel %vm153, %v145, %v150
    %v155 = vmul.f32 %v143, %v154
    %v156 = vld [vmem:[%s3] sm:$0x1]
    %v157 = vmul.f32 %v133, %v155
    %v158 = vsub.f32 %v156, %v157
    %v160 = vperm.slane %v155, 0
    %v162 = vmul.f32 %v117, %v160
    %v164 = vperm.slane %v158, 0
    %v166 = vadd.f32 %v162, %v164
    %v167 = vmax.f32 %v166, 0.0
    %v168 = vpack.c.bf16 %v167, %v167
    %v169 = vld [vmem:[#allocation7] sm:$0xff]
    %v170 = vld [vmem:[#allocation7 + $0x8] sm:$0xff]
    %v171 = vld [vmem:[#allocation7 + $0x10] sm:$0xff]
    %v172 = vld [vmem:[#allocation7 + $0x18] sm:$0xff]
    %v173 = vld [vmem:[#allocation7 + $0x20] sm:$0xff]
    %v174 = vld [vmem:[#allocation7 + $0x28] sm:$0xff]
    %v175 = vld [vmem:[#allocation7 + $0x30] sm:$0xff]
    %v176 = vld [vmem:[#allocation7 + $0x38] sm:$0xff]
    %v177 = vld [vmem:[#allocation7 + $0x40] sm:$0xff]
    %v178 = vld [vmem:[#allocation7 + $0x48] sm:$0xff]
    %v179 = vld [vmem:[#allocation7 + $0x50] sm:$0xff]
    %v180 = vld [vmem:[#allocation7 + $0x58] sm:$0xff]
    %v181 = vld [vmem:[#allocation7 + $0x60] sm:$0xff]
    %v182 = vld [vmem:[#allocation7 + $0x68] sm:$0xff]
    %v183 = vld [vmem:[#allocation7 + $0x70] sm:$0xff]
    %v184 = vld [vmem:[#allocation7 + $0x78] sm:$0xff]
    %v185 = vpack.c.bf16 %v170, %v169
    %v186 = vpack.c.bf16 %v172, %v171
    %v187 = vpack.c.bf16 %v174, %v173
    %v188 = vpack.c.bf16 %v176, %v175
    %v189 = vpack.c.bf16 %v178, %v177
    %v190 = vpack.c.bf16 %v180, %v179
    %v191 = vpack.c.bf16 %v182, %v181
    %v192 = vpack.c.bf16 %v184, %v183
    %193 = vmatpush.bf16.msra.mxu0 %v192
    %194 = vmatpush.bf16.msra.mxu0 %v191
    %195 = vmatpush.bf16.msra.mxu0 %v190
    %196 = vmatpush.bf16.msra.mxu0 %v189
    %197 = vmatpush.bf16.msra.mxu0 %v188
    %198 = vmatpush.bf16.msra.mxu0 %v187
    %199 = vmatpush.bf16.msra.mxu0 %v186
    %200 = vmatpush.bf16.msra.mxu0 %v185
    %201 = vmatmul.bf16.gmra.mxu0 %v168
    %v202 = vpop.f32.mrf.mxu0
    %v203 = vadd.f32 0.0, %v202
    %v204 = vpop.f32.mrf.mxu0
    %205 = vdwg.mxu0
    %v206 = vrot.slane %v203, 4
    %v207 = vadd.f32 %v203, %v206
    %v208 = vrot.slane %v207, 2
    %v209 = vadd.f32 %v207, %v208
    %v210 = vrot.slane %v209, 1
    %v211 = vadd.f32 %v209, %v210
    %v212 = vmul.f32 %v211, %v132
    %v213 = vsub.f32 %v203, %v212
    %v214 = vmul.f32 %v213, %v213
    %v215 = vrot.slane %v214, 4
    %v216 = vadd.f32 %v214, %v215
    %v217 = vrot.slane %v216, 2
    %v218 = vadd.f32 %v216, %v217
    %v219 = vrot.slane %v218, 1
    %v220 = vadd.f32 %v218, %v219
    %v221 = vmul.f32 %v220, %v132
    %v222 = vld [vmem:[%s5] sm:$0x1]
    %v223 = vadd.f32 %v221, 1e-05
    %v224 = vrsqrt.pop %v223
    %v225 = vmul.f32 %v224, %v223
    %v226 = vmul.f32 %v225, %v224
    %v227 = vmul.f32 0.5, %v226
    %v228 = vsub.f32 1.5, %v227
    %v229 = vmul.f32 %v224, %v228
    %vm230 = vweird.f32 %v223
    %vm231 = vweird.f32 %v224
    %vm232 = vmor %vm230, %vm231
    %v233 = vsel %vm232, %v224, %v229
    %v234 = vmul.f32 %v222, %v233
    %v235 = vld [vmem:[%s6] sm:$0x1]
    %v236 = vmul.f32 %v212, %v234
    %v237 = vsub.f32 %v235, %v236
    %v239 = vperm.slane %v234, 0
    %v241 = vmul.f32 %v203, %v239
    %v243 = vperm.slane %v237, 0
    %v245 = vadd.f32 %v241, %v243
    %v246 = vmax.f32 %v245, 0.0
    %v247 = vpack.c.bf16 %v246, %v246
    %v248 = vld [vmem:[#allocation8] sm:$0xff]
    %v249 = vld [vmem:[#allocation8 + $0x8] sm:$0xff]
    %v250 = vld [vmem:[#allocation8 + $0x10] sm:$0xff]
    %v251 = vld [vmem:[#allocation8 + $0x18] sm:$0xff]
    %v252 = vld [vmem:[#allocation8 + $0x20] sm:$0xff]
    %v253 = vld [vmem:[#allocation8 + $0x28] sm:$0xff]
    %v254 = vld [vmem:[#allocation8 + $0x30] sm:$0xff]
    %v255 = vld [vmem:[#allocation8 + $0x38] sm:$0xff]
    %v256 = vld [vmem:[#allocation8 + $0x40] sm:$0xff]
    %v257 = vld [vmem:[#allocation8 + $0x48] sm:$0xff]
    %v258 = vld [vmem:[#allocation8 + $0x50] sm:$0xff]
    %v259 = vld [vmem:[#allocation8 + $0x58] sm:$0xff]
    %v260 = vld [vmem:[#allocation8 + $0x60] sm:$0xff]
    %v261 = vld [vmem:[#allocation8 + $0x68] sm:$0xff]
    %v262 = vld [vmem:[#allocation8 + $0x70] sm:$0xff]
    %v263 = vld [vmem:[#allocation8 + $0x78] sm:$0xff]
    %v264 = vpack.c.bf16 %v249, %v248
    %v265 = vpack.c.bf16 %v251, %v250
    %v266 = vpack.c.bf16 %v253, %v252
    %v267 = vpack.c.bf16 %v255, %v254
    %v268 = vpack.c.bf16 %v257, %v256
    %v269 = vpack.c.bf16 %v259, %v258
    %v270 = vpack.c.bf16 %v261, %v260
    %v271 = vpack.c.bf16 %v263, %v262
    %v272 = vld [vmem:[%s8] sm:$0x1]
    %v274 = vperm.slane %v272, 0
    %276 = vmatpush.bf16.msra.mxu0 %v271
    %277 = vmatpush.bf16.msra.mxu0 %v270
    %278 = vmatpush.bf16.msra.mxu0 %v269
    %279 = vmatpush.bf16.msra.mxu0 %v268
    %280 = vmatpush.bf16.msra.mxu0 %v267
    %281 = vmatpush.bf16.msra.mxu0 %v266
    %282 = vmatpush.bf16.msra.mxu0 %v265
    %283 = vmatpush.bf16.msra.mxu0 %v264
    %284 = vmatmul.bf16.gmra.mxu0 %v247
    %v285 = vpop.f32.mrf.mxu0
    %v286 = vadd.f32 %v274, %v285
    %v287 = vpop.f32.mrf.mxu0
    %288 = vdwg.mxu0
    %v289 = vlaneseq
    %v290 = vand.u32 %v289, 127
    %v291 = vsub.f32 0.0, %v286
    %v292 = vmul.f32 %v291, 1.442695
    %v293 = vpow.pop %v292
    %v294 = vadd.f32 %v293, 1.0
    %v295 = vrcp.pop %v294
    %v296 = vmax.f32 %v286, 0.0
    %vm297 = vcmp.lt.s32.totalorder %v290, 5
    %v298 = vsel %vm297, %v295, %v296
    %299 = vst [vmem:[#allocation10] sm:$0xff] %v298
    // Predicated region
    $region54: #{tpu_custom_call.1} parent=1 // pred_check
      _
    $region55: #{tpu_custom_call.1} parent=1 // pred_check_branch
      %301 = sbr.rel (0) target = $region57
    $region56: #{tpu_custom_call.1} parent=1 // pred_region
      %303 = vsyncadd [#allocation4], 0
      %s305 = sshll.u32 [#allocation10], 4
      %s306 = int_to_ptr.vmem [resolvable:$true] %s305
      %s307 = sshll.u32 %s9, 4
      %s308 = int_to_ptr.hbm [resolvable:$true] %s307
      %310 = dma.vmem_to_hbm [thread:$0]  %s306, 128, %s308, [#allocation4]
    $region57: #{tpu_custom_call.1} parent=1 // pred_fallthru
      _
    // Predicated region
    $region58: #{tpu_custom_call.1} parent=1 // pred_check
      _
    $region59: #{tpu_custom_call.1} parent=1 // pred_check_branch
      %312 = sbr.rel (0) target = $region61
    $region60: #{tpu_custom_call.1} parent=1 // pred_region
      %314 = dma.done [#allocation4], 128
    $region61: #{tpu_custom_call.1} parent=1 // pred_fallthru
      _
    %315 = vsyncpa [#allocation3], 1
    %316 = vsyncpa [#allocation6], 1
    %317 = vsyncpa [#allocation9], 1
    %318 = vsyncpa [#allocation4], 1

</llo_original>
